<compile_context>
chip_gen: v6e
topology: v6e:2x2x1
jax: 0.10.0
libtpu: 0.0.40
codegen_flags: <defaults>
</compile_context>

<pallas_src>
import functools

import jax
import jax.numpy as jnp
from jax.experimental import pallas as pl
from jax.experimental.pallas import tpu as pltpu

NUM_TIMESTEP = 1000
TIME_EMBED_DIM = 32
BN_EPS = 1e-5


# ------------------------------- kernel ------------------------------------ #

def doubleconv_pool_kernel(lhs0_ref, b0_ref, b1_ref, te_ref,
                           conv_ref, pool_ref, *, h, cout):
    """Fused DoubleConv (conv-bn-relu, +temb, conv-bn-relu) + 2x2/2 max-pool.

    Layouts (lane axis last):
      lhs0_ref : (N*H, 3*W*Cinp)  bf16  conv0 lhs, dy-shifted slabs lane-concatenated
      b0_ref   : (3*W*Cinp, F)    bf16  banded conv0 weights, K-stacked over dy
      b1_ref   : (3*F, F)         bf16  banded conv1 weights, K-stacked over dy
      te_ref   : (N, F)           f32   Linear(time_emb[t]) tiled along W
      conv_ref : (N*H, F)         f32   convolved output (dense 128-lane stores)
      pool_ref : (N*H, F)         f32   2x2 max field; wrapper keeps even (y, x)
    with F = W*Cout.
    """
    rows, f = conv_ref.shape
    n = rows // h
    w = f // cout
    inv_count = 1.0 / float(rows * w)            # 1 / (N*H*W)

    def channel_mean(v):
        # Per-channel mean over (N, H, W): sublane (row) reduction first, then a
        # log2(W) tree of circular lane rolls sums the W same-channel lanes.
        s = jnp.sum(v, axis=0, keepdims=True)                 # (1, F)  XLU
        shift = cout
        while shift < f:                                      # static unroll
            s = s + pltpu.roll(s, shift, axis=1)              # XLU lane rotate
            shift *= 2
        return s * inv_count                                  # every lane = its channel mean

    def bn_relu(acc):
        mean = channel_mean(acc)
        cent = acc - mean
        var = channel_mean(cent * cent)                       # biased (training-mode) var
        return jnp.maximum(cent * jax.lax.rsqrt(var + BN_EPS), 0.0)

    # ---- conv0 -> bn0 -> relu -> + Linear(time_embedding) ------------------ #
    acc0 = jnp.dot(lhs0_ref[...], b0_ref[...], preferred_element_type=jnp.float32)
    te_rows = jax.lax.broadcast_in_dim(te_ref[...], (n, h, f), (0, 2)).reshape(rows, f)
    stage1 = bn_relu(acc0) + te_rows                          # (rows, F) f32, stays in vregs

    # ---- conv1 operands: dy-shifted copies of stage1 ('same' padding along H) #
    y_idx = jax.lax.broadcasted_iota(jnp.int32, (rows, f), 0) % h
    up = jnp.where(y_idx == 0, 0.0,
                   pltpu.roll(stage1, 1, axis=0))             # row y-1 (zero at y==0)
    down = jnp.where(y_idx == h - 1, 0.0,
                     pltpu.roll(stage1, rows - 1, axis=0))    # row y+1 (zero at y==h-1)
    lhs1 = jnp.concatenate([up, stage1, down], axis=1).astype(jnp.bfloat16)

    # ---- conv1 -> bn1 -> relu ---------------------------------------------- #
    acc1 = jnp.dot(lhs1, b1_ref[...], preferred_element_type=jnp.float32)
    act1 = bn_relu(acc1)
    conv_ref[...] = act1                                      # unmasked 128-lane stores

    # ---- 2x2 / stride-2 max-pool: two roll+max steps ------------------------ #
    pw = jnp.maximum(act1, pltpu.roll(act1, f - cout, axis=1))      # x vs x+1 (lane)
    pool_ref[...] = jnp.maximum(pw, pltpu.roll(pw, rows - 1, axis=0))  # y vs y+1 (sublane)


# ------------------------------- wrapper ----------------------------------- #

def _vmem_spec():
    return pl.BlockSpec(memory_space=pltpu.MemorySpace.VMEM)


def sinusoidal_time_embedding(t):
    """Rows of the TimeEmbedding table at integer timesteps t. Shape (N, 32)."""
    tf = t.astype(jnp.float32)[:, None]
    i = jnp.arange(0, TIME_EMBED_DIM, 2, dtype=jnp.float32)
    denom = jnp.power(10000.0, i / TIME_EMBED_DIM)
    even = jnp.sin(tf / denom)
    odd = jnp.cos(tf / denom)
    return jnp.stack([even, odd], axis=2).reshape(t.shape[0], TIME_EMBED_DIM)


def _banded_conv_weights(w_hwio, width):
    """HWIO (3, 3, Cin, Cout) -> (3*width*Cin, width*Cout) block-banded bf16.

    B[dy*W*Cin + sx*Cin + ci, x*Cout + co] = w[dy, dx, ci, co] with sx = x+dx-1;
    out-of-range source columns are dropped, which is exactly the 'same' zero
    padding along W folded into the weights (K is stacked over dy for one dot)."""
    xs = jnp.arange(width)
    band = jnp.stack([(xs[:, None] == xs[None, :] + dx - 1) for dx in range(3)])
    band = band.astype(jnp.float32)                           # band[dx, sx, x]
    b = jnp.einsum('dsx,ydio->ysixo', band, w_hwio.astype(jnp.float32))
    three, _, cin_, _, cout_ = b.shape
    return b.reshape(three * width * cin_, width * cout_).astype(jnp.bfloat16)


def downsample_forward(x_nchw, t, params):
    """DownSample.forward. x_nchw: (N, Cin, H, W) f32; t: (N,) int timesteps.

    Returns (convolved, maxpooled) in NCHW, matching the PyTorch module
    (BatchNorm in training mode, fresh gamma=1 / beta=0).  Requires H, W even
    and W a power of two (true for the usual UNet feature maps)."""
    n, cin, h, w = x_nchw.shape
    cout = params["w0"].shape[-1]
    assert h % 2 == 0 and w % 2 == 0
    assert w & (w - 1) == 0, "W must be a power of two for the lane-roll reductions"
    f = w * cout
    rows = n * h
    cinp = -(-cin // 8) * 8        # pad Cin to a multiple of 8 -> lane-dense conv0 lhs

    # Time-embedding + its Linear stay in XLA (tiny, MXU-starved); the kernel
    # broadcasts the (N, W*Cout) result across H in-register.
    temb = sinusoidal_time_embedding(t)                                  # (N, 32)
    te = temb @ params["lin_w"] + params["lin_b"]                        # (N, Cout)
    te_lane = jnp.tile(te, (1, w)).astype(jnp.float32)                   # (N, W*Cout)

    # NCHW -> lane-dense NHWC slabs; build the conv0 lhs (three dy-shifted slabs,
    # lane-concatenated) in the wrapper: pure layout plumbing.
    x_nhwc = jnp.transpose(x_nchw.astype(jnp.float32), (0, 2, 3, 1))     # (N, H, W, Cin)
    x_nhwc = jnp.pad(x_nhwc, ((0, 0), (0, 0), (0, 0), (0, cinp - cin)))
    x_flat = x_nhwc.reshape(n, h, w * cinp)
    x_halo = jnp.pad(x_flat, ((0, 0), (1, 1), (0, 0)))                   # H halo only
    lhs0 = jnp.concatenate([x_halo[:, dy:dy + h, :] for dy in range(3)], axis=-1)
    lhs0 = lhs0.reshape(rows, 3 * w * cinp).astype(jnp.bfloat16)

    w0p = jnp.pad(params["w0"], ((0, 0), (0, 0), (0, cinp - cin), (0, 0)))
    b0 = _banded_conv_weights(w0p, w)                                    # (3*W*Cinp, F)
    b1 = _banded_conv_weights(params["w1"], w)                           # (3*F, F)

    flops = 2 * rows * (3 * w * cinp) * f + 2 * rows * (3 * f) * f
    bytes_accessed = ((lhs0.size + b0.size + b1.size) * 2
                      + te_lane.size * 4 + 2 * rows * f * 4)

    conv2d, poolfield = pl.pallas_call(
        functools.partial(doubleconv_pool_kernel, h=h, cout=cout),
        out_shape=(jax.ShapeDtypeStruct((rows, f), jnp.float32),
                   jax.ShapeDtypeStruct((rows, f), jnp.float32)),
        in_specs=[_vmem_spec()] * 4,
        out_specs=(_vmem_spec(), _vmem_spec()),
        cost_estimate=pl.CostEstimate(flops=int(flops), transcendentals=4 * f,
                                      bytes_accessed=int(bytes_accessed)),
    )(lhs0, b0, b1, te_lane)

    # Back to the PyTorch NCHW convention; keep even (y, x) of the 2x2 max field.
    convolved = jnp.transpose(conv2d.reshape(n, h, w, cout), (0, 3, 1, 2))
    pooled = poolfield.reshape(n, h // 2, 2, w // 2, 2, cout)[:, :, 0, :, 0, :]
    pooled = jnp.transpose(pooled, (0, 3, 1, 2))
    return convolved, pooled


# --------------------------------- main ------------------------------------- #

if __name__ == "__main__":
    key = jax.random.PRNGKey(0)
    k1, k2, k3, k4, k5, k6 = jax.random.split(key, 6)

    N, Cin, Cout, H, W = 2, 4, 8, 16, 16

    x = jax.random.normal(k1, (N, Cin, H, W), jnp.float32)
    t = jax.random.randint(k2, (N,), 0, NUM_TIMESTEP)

    # Synthetic parameters: conv weights in HWIO (= torch weight.permute(2,3,1,0)),
    # linear.weight^T -> (32, Cout), linear.bias -> (1, Cout).
    params = {
        "w0": 0.1 * jax.random.normal(k3, (3, 3, Cin, Cout), jnp.float32),
        "w1": 0.1 * jax.random.normal(k4, (3, 3, Cout, Cout), jnp.float32),
        "lin_w": 0.1 * jax.random.normal(k5, (TIME_EMBED_DIM, Cout), jnp.float32),
        "lin_b": 0.1 * jax.random.normal(k6, (1, Cout), jnp.float32),
    }

    fwd = jax.jit(downsample_forward)
    convolved, pooled = fwd(x, t, params)
    jax.block_until_ready((convolved, pooled))

    assert convolved.shape == (N, Cout, H, W)
    assert pooled.shape == (N, Cout, H // 2, W // 2)
    print("KERNEL_OK")
</pallas_src>

<mosaic_0001>
module attributes {stable_mosaic.version = 11 : i64} {
  func.func @doubleconv_pool_kernel(%arg0: memref<32x384xbf16, #tpu.memory_space<vmem>>, %arg1: memref<384x128xbf16, #tpu.memory_space<vmem>>, %arg2: memref<384x128xbf16, #tpu.memory_space<vmem>>, %arg3: memref<2x128xf32, #tpu.memory_space<vmem>>, %arg4: memref<32x128xf32, #tpu.memory_space<vmem>>, %arg5: memref<32x128xf32, #tpu.memory_space<vmem>>) attributes {dimension_semantics = [], scalar_prefetch = 0 : i64, scratch_operands = 0 : i64, tpu.core_type = #tpu.core_type<tc>} {
    %c0 = arith.constant 0 : index
    %c0_0 = arith.constant 0 : index
    %0 = vector.load %arg0[%c0, %c0_0] : memref<32x384xbf16, #tpu.memory_space<vmem>>, vector<32x384xbf16>
    %c0_1 = arith.constant 0 : index
    %c0_2 = arith.constant 0 : index
    %1 = vector.load %arg1[%c0_1, %c0_2] : memref<384x128xbf16, #tpu.memory_space<vmem>>, vector<384x128xbf16>
    %cst = arith.constant dense<0.000000e+00> : vector<32x128xf32>
    %2 = tpu.matmul %0, %1, %cst {dimension_numbers = #tpu.dot_dimension_numbers<[1], [0], [0], [1], [0, 0, 1, 1], [], []>} : vector<32x384xbf16>, vector<384x128xbf16>, vector<32x128xf32> -> vector<32x128xf32>
    %c0_3 = arith.constant 0 : index
    %c0_4 = arith.constant 0 : index
    %3 = vector.load %arg3[%c0_3, %c0_4] : memref<2x128xf32, #tpu.memory_space<vmem>>, vector<2x128xf32>
    %4 = vector.shape_cast %3 : vector<2x128xf32> to vector<2x1x128xf32>
    %5 = vector.broadcast %4 : vector<2x1x128xf32> to vector<2x16x128xf32>
    %6 = vector.shape_cast %5 : vector<2x16x128xf32> to vector<32x128xf32>
    %cst_5 = arith.constant dense<0.000000e+00> : vector<128xf32>
    %7 = vector.multi_reduction <add>, %2, %cst_5 [0] : vector<32x128xf32> to vector<128xf32>
    %8 = vector.shape_cast %7 : vector<128xf32> to vector<1x128xf32>
    %c8_i32 = arith.constant 8 : i32
    %9 = tpu.dynamic_rotate %8 by %c8_i32 dim 1 : vector<1x128xf32>, i32 -> vector<1x128xf32>
    %10 = arith.addf %8, %9 : vector<1x128xf32>
    %c16_i32 = arith.constant 16 : i32
    %11 = tpu.dynamic_rotate %10 by %c16_i32 dim 1 : vector<1x128xf32>, i32 -> vector<1x128xf32>
    %12 = arith.addf %10, %11 : vector<1x128xf32>
    %c32_i32 = arith.constant 32 : i32
    %13 = tpu.dynamic_rotate %12 by %c32_i32 dim 1 : vector<1x128xf32>, i32 -> vector<1x128xf32>
    %14 = arith.addf %12, %13 : vector<1x128xf32>
    %c64_i32 = arith.constant 64 : i32
    %15 = tpu.dynamic_rotate %14 by %c64_i32 dim 1 : vector<1x128xf32>, i32 -> vector<1x128xf32>
    %16 = arith.addf %14, %15 : vector<1x128xf32>
    %cst_6 = arith.constant 0.001953125 : f32
    %17 = vector.broadcast %cst_6 : f32 to vector<1x128xf32>
    %18 = arith.mulf %16, %17 : vector<1x128xf32>
    %19 = vector.broadcast %18 : vector<1x128xf32> to vector<32x128xf32>
    %20 = arith.subf %2, %19 : vector<32x128xf32>
    %21 = arith.mulf %20, %20 : vector<32x128xf32>
    %cst_7 = arith.constant dense<0.000000e+00> : vector<128xf32>
    %22 = vector.multi_reduction <add>, %21, %cst_7 [0] : vector<32x128xf32> to vector<128xf32>
    %23 = vector.shape_cast %22 : vector<128xf32> to vector<1x128xf32>
    %c8_i32_8 = arith.constant 8 : i32
    %24 = tpu.dynamic_rotate %23 by %c8_i32_8 dim 1 : vector<1x128xf32>, i32 -> vector<1x128xf32>
    %25 = arith.addf %23, %24 : vector<1x128xf32>
    %c16_i32_9 = arith.constant 16 : i32
    %26 = tpu.dynamic_rotate %25 by %c16_i32_9 dim 1 : vector<1x128xf32>, i32 -> vector<1x128xf32>
    %27 = arith.addf %25, %26 : vector<1x128xf32>
    %c32_i32_10 = arith.constant 32 : i32
    %28 = tpu.dynamic_rotate %27 by %c32_i32_10 dim 1 : vector<1x128xf32>, i32 -> vector<1x128xf32>
    %29 = arith.addf %27, %28 : vector<1x128xf32>
    %c64_i32_11 = arith.constant 64 : i32
    %30 = tpu.dynamic_rotate %29 by %c64_i32_11 dim 1 : vector<1x128xf32>, i32 -> vector<1x128xf32>
    %31 = arith.addf %29, %30 : vector<1x128xf32>
    %cst_12 = arith.constant 0.001953125 : f32
    %32 = vector.broadcast %cst_12 : f32 to vector<1x128xf32>
    %33 = arith.mulf %31, %32 : vector<1x128xf32>
    %cst_13 = arith.constant 9.99999974E-6 : f32
    %34 = vector.broadcast %cst_13 : f32 to vector<1x128xf32>
    %35 = arith.addf %33, %34 : vector<1x128xf32>
    %36 = math.rsqrt %35 : vector<1x128xf32>
    %37 = vector.broadcast %36 : vector<1x128xf32> to vector<32x128xf32>
    %38 = arith.mulf %20, %37 : vector<32x128xf32>
    %cst_14 = arith.constant 0.000000e+00 : f32
    %39 = vector.broadcast %cst_14 : f32 to vector<32x128xf32>
    %40 = arith.maximumf %38, %39 : vector<32x128xf32>
    %41 = arith.addf %40, %6 : vector<32x128xf32>
    %42 = tpu.iota {dimensions = array<i32: 0>} : vector<32x128xi32>
    %c16_i32_15 = arith.constant 16 : i32
    %c0_i32 = arith.constant 0 : i32
    %43 = arith.cmpi eq, %c16_i32_15, %c0_i32 : i32
    %c1_i32 = arith.constant 1 : i32
    %44 = arith.select %43, %c1_i32, %c16_i32_15 : i32
    %45 = vector.broadcast %44 : i32 to vector<32x128xi32>
    %46 = arith.remsi %42, %45 : vector<32x128xi32>
    %c0_i32_16 = arith.constant 0 : i32
    %47 = vector.broadcast %c0_i32_16 : i32 to vector<32x128xi32>
    %48 = arith.cmpi ne, %46, %47 : vector<32x128xi32>
    %c0_i32_17 = arith.constant 0 : i32
    %49 = vector.broadcast %c0_i32_17 : i32 to vector<32x128xi32>
    %50 = arith.cmpi slt, %46, %49 : vector<32x128xi32>
    %c0_i32_18 = arith.constant 0 : i32
    %51 = arith.cmpi slt, %44, %c0_i32_18 : i32
    %52 = vector.broadcast %51 : i1 to vector<32x128xi1>
    %53 = vector.broadcast %52 : vector<32x128xi1> to vector<32x128xi1>
    %54 = arith.xori %50, %53 : vector<32x128xi1>
    %55 = arith.andi %54, %48 : vector<32x128xi1>
    %56 = vector.broadcast %44 : i32 to vector<32x128xi32>
    %57 = arith.addi %46, %56 : vector<32x128xi32>
    %58 = arith.select %55, %57, %46 : vector<32x128xi1>, vector<32x128xi32>
    %c0_i32_19 = arith.constant 0 : i32
    %59 = vector.broadcast %c0_i32_19 : i32 to vector<32x128xi32>
    %60 = arith.cmpi eq, %58, %59 : vector<32x128xi32>
    %c1_i32_20 = arith.constant 1 : i32
    %61 = tpu.dynamic_rotate %41 by %c1_i32_20 dim 0 : vector<32x128xf32>, i32 -> vector<32x128xf32>
    %cst_21 = arith.constant 0.000000e+00 : f32
    %62 = vector.broadcast %cst_21 : f32 to vector<32x128xf32>
    %63 = arith.select %60, %62, %61 : vector<32x128xi1>, vector<32x128xf32>
    %c15_i32 = arith.constant 15 : i32
    %64 = vector.broadcast %c15_i32 : i32 to vector<32x128xi32>
    %65 = arith.cmpi eq, %58, %64 : vector<32x128xi32>
    %c31_i32 = arith.constant 31 : i32
    %66 = tpu.dynamic_rotate %41 by %c31_i32 dim 0 : vector<32x128xf32>, i32 -> vector<32x128xf32>
    %cst_22 = arith.constant 0.000000e+00 : f32
    %67 = vector.broadcast %cst_22 : f32 to vector<32x128xf32>
    %68 = arith.select %65, %67, %66 : vector<32x128xi1>, vector<32x128xf32>
    %69 = tpu.concatenate %63, %41, %68 in 1 : vector<32x128xf32>, vector<32x128xf32>, vector<32x128xf32> -> vector<32x384xf32>
    %70 = arith.truncf %69 : vector<32x384xf32> to vector<32x384xbf16>
    %c0_23 = arith.constant 0 : index
    %c0_24 = arith.constant 0 : index
    %71 = vector.load %arg2[%c0_23, %c0_24] : memref<384x128xbf16, #tpu.memory_space<vmem>>, vector<384x128xbf16>
    %cst_25 = arith.constant dense<0.000000e+00> : vector<32x128xf32>
    %72 = tpu.matmul %70, %71, %cst_25 {dimension_numbers = #tpu.dot_dimension_numbers<[1], [0], [0], [1], [0, 0, 1, 1], [], []>} : vector<32x384xbf16>, vector<384x128xbf16>, vector<32x128xf32> -> vector<32x128xf32>
    %cst_26 = arith.constant dense<0.000000e+00> : vector<128xf32>
    %73 = vector.multi_reduction <add>, %72, %cst_26 [0] : vector<32x128xf32> to vector<128xf32>
    %74 = vector.shape_cast %73 : vector<128xf32> to vector<1x128xf32>
    %c8_i32_27 = arith.constant 8 : i32
    %75 = tpu.dynamic_rotate %74 by %c8_i32_27 dim 1 : vector<1x128xf32>, i32 -> vector<1x128xf32>
    %76 = arith.addf %74, %75 : vector<1x128xf32>
    %c16_i32_28 = arith.constant 16 : i32
    %77 = tpu.dynamic_rotate %76 by %c16_i32_28 dim 1 : vector<1x128xf32>, i32 -> vector<1x128xf32>
    %78 = arith.addf %76, %77 : vector<1x128xf32>
    %c32_i32_29 = arith.constant 32 : i32
    %79 = tpu.dynamic_rotate %78 by %c32_i32_29 dim 1 : vector<1x128xf32>, i32 -> vector<1x128xf32>
    %80 = arith.addf %78, %79 : vector<1x128xf32>
    %c64_i32_30 = arith.constant 64 : i32
    %81 = tpu.dynamic_rotate %80 by %c64_i32_30 dim 1 : vector<1x128xf32>, i32 -> vector<1x128xf32>
    %82 = arith.addf %80, %81 : vector<1x128xf32>
    %cst_31 = arith.constant 0.001953125 : f32
    %83 = vector.broadcast %cst_31 : f32 to vector<1x128xf32>
    %84 = arith.mulf %82, %83 : vector<1x128xf32>
    %85 = vector.broadcast %84 : vector<1x128xf32> to vector<32x128xf32>
    %86 = arith.subf %72, %85 : vector<32x128xf32>
    %87 = arith.mulf %86, %86 : vector<32x128xf32>
    %cst_32 = arith.constant dense<0.000000e+00> : vector<128xf32>
    %88 = vector.multi_reduction <add>, %87, %cst_32 [0] : vector<32x128xf32> to vector<128xf32>
    %89 = vector.shape_cast %88 : vector<128xf32> to vector<1x128xf32>
    %c8_i32_33 = arith.constant 8 : i32
    %90 = tpu.dynamic_rotate %89 by %c8_i32_33 dim 1 : vector<1x128xf32>, i32 -> vector<1x128xf32>
    %91 = arith.addf %89, %90 : vector<1x128xf32>
    %c16_i32_34 = arith.constant 16 : i32
    %92 = tpu.dynamic_rotate %91 by %c16_i32_34 dim 1 : vector<1x128xf32>, i32 -> vector<1x128xf32>
    %93 = arith.addf %91, %92 : vector<1x128xf32>
    %c32_i32_35 = arith.constant 32 : i32
    %94 = tpu.dynamic_rotate %93 by %c32_i32_35 dim 1 : vector<1x128xf32>, i32 -> vector<1x128xf32>
    %95 = arith.addf %93, %94 : vector<1x128xf32>
    %c64_i32_36 = arith.constant 64 : i32
    %96 = tpu.dynamic_rotate %95 by %c64_i32_36 dim 1 : vector<1x128xf32>, i32 -> vector<1x128xf32>
    %97 = arith.addf %95, %96 : vector<1x128xf32>
    %cst_37 = arith.constant 0.001953125 : f32
    %98 = vector.broadcast %cst_37 : f32 to vector<1x128xf32>
    %99 = arith.mulf %97, %98 : vector<1x128xf32>
    %cst_38 = arith.constant 9.99999974E-6 : f32
    %100 = vector.broadcast %cst_38 : f32 to vector<1x128xf32>
    %101 = arith.addf %99, %100 : vector<1x128xf32>
    %102 = math.rsqrt %101 : vector<1x128xf32>
    %103 = vector.broadcast %102 : vector<1x128xf32> to vector<32x128xf32>
    %104 = arith.mulf %86, %103 : vector<32x128xf32>
    %cst_39 = arith.constant 0.000000e+00 : f32
    %105 = vector.broadcast %cst_39 : f32 to vector<32x128xf32>
    %106 = arith.maximumf %104, %105 : vector<32x128xf32>
    %c0_40 = arith.constant 0 : index
    %c0_41 = arith.constant 0 : index
    %107 = vector.load %arg4[%c0_40, %c0_41] : memref<32x128xf32, #tpu.memory_space<vmem>>, vector<32x128xf32>
    tpu.vector_store %arg4[%c0_40, %c0_41], %106 {strides = array<i32>} : memref<32x128xf32, #tpu.memory_space<vmem>>, vector<32x128xf32>,
    %c120_i32 = arith.constant 120 : i32
    %108 = tpu.dynamic_rotate %106 by %c120_i32 dim 1 : vector<32x128xf32>, i32 -> vector<32x128xf32>
    %109 = arith.maximumf %106, %108 : vector<32x128xf32>
    %c31_i32_42 = arith.constant 31 : i32
    %110 = tpu.dynamic_rotate %109 by %c31_i32_42 dim 0 : vector<32x128xf32>, i32 -> vector<32x128xf32>
    %111 = arith.maximumf %109, %110 : vector<32x128xf32>
    %c0_43 = arith.constant 0 : index
    %c0_44 = arith.constant 0 : index
    %112 = vector.load %arg5[%c0_43, %c0_44] : memref<32x128xf32, #tpu.memory_space<vmem>>, vector<32x128xf32>
    tpu.vector_store %arg5[%c0_43, %c0_44], %111 {strides = array<i32>} : memref<32x128xf32, #tpu.memory_space<vmem>>, vector<32x128xf32>,
    return
  }
}

</mosaic_0001>

<llo_original>
// kernel: tile.9
$region0: #{tile.9}
  %s0 = inlined_call_operand.vmem [shape: f32[2,16,8], index: 0, kind: input, shape index: {}]
  %s1 = inlined_call_operand.vmem [shape: f32[2,128], index: 1, kind: output, shape index: {}]
  $region1: #{tile.9} parent=0
    #allocation0 [shape = 'u8[4096]{0}', space=vmem, size = 0x1000, scoped, tag = 'scoped mem for output reshape']
    %s2 = smov 3
    %v3 = vld [vmem:[%s0] ss:$16 sm:%s2]
    %vm4 = vcmask 64512
    %5 = vst.msk [vmem:[#allocation0] sm:$0x3] %vm4, %v3
    %s6 = scalar_lea.vmem %s0, 15
    %s7 = smov 3
    %v8 = vld [vmem:[%s6] ss:$16 sm:%s7]
    %9 = vrot.lane.b32.xlu0 %v8, 120
    %v10 = vpop.permute.xlu0 %9
    %vm11 = vcmask 1048512
    %12 = vst.msk [vmem:[#allocation0] sm:$0x3] %vm11, %v10
    %s13 = scalar_lea.vmem %s0, 14
    %s14 = smov 3
    %v15 = vld [vmem:[%s13] ss:$16 sm:%s14]
    %16 = vrot.lane.b32.xlu0 %v15, 112
    %v17 = vpop.permute.xlu0 %16
    %vm18 = vcmask 982912
    %19 = vst.msk [vmem:[#allocation0] sm:$0x3] %vm18, %v17
    %s20 = scalar_lea.vmem %s0, 13
    %s21 = smov 3
    %v22 = vld [vmem:[%s20] ss:$16 sm:%s21]
    %23 = vrot.lane.b32.xlu0 %v22, 104
    %v24 = vpop.permute.xlu0 %23
    %vm25 = vcmask 917312
    %26 = vst.msk [vmem:[#allocation0] sm:$0x3] %vm25, %v24
    %s27 = scalar_lea.vmem %s0, 12
    %s28 = smov 3
    %v29 = vld [vmem:[%s27] ss:$16 sm:%s28]
    %30 = vrot.lane.b32.xlu0 %v29, 96
    %v31 = vpop.permute.xlu0 %30
    %vm32 = vcmask 851712
    %33 = vst.msk [vmem:[#allocation0] sm:$0x3] %vm32, %v31
    %s34 = scalar_lea.vmem %s0, 11
    %s35 = smov 3
    %v36 = vld [vmem:[%s34] ss:$16 sm:%s35]
    %37 = vrot.lane.b32.xlu0 %v36, 88
    %v38 = vpop.permute.xlu0 %37
    %vm39 = vcmask 786112
    %40 = vst.msk [vmem:[#allocation0] sm:$0x3] %vm39, %v38
    %s41 = scalar_lea.vmem %s0, 10
    %s42 = smov 3
    %v43 = vld [vmem:[%s41] ss:$16 sm:%s42]
    %44 = vrot.lane.b32.xlu0 %v43, 80
    %v45 = vpop.permute.xlu0 %44
    %vm46 = vcmask 720512
    %47 = vst.msk [vmem:[#allocation0] sm:$0x3] %vm46, %v45
    %s48 = scalar_lea.vmem %s0, 9
    %s49 = smov 3
    %v50 = vld [vmem:[%s48] ss:$16 sm:%s49]
    %51 = vrot.lane.b32.xlu0 %v50, 72
    %v52 = vpop.permute.xlu0 %51
    %vm53 = vcmask 654912
    %54 = vst.msk [vmem:[#allocation0] sm:$0x3] %vm53, %v52
    %s55 = scalar_lea.vmem %s0, 8
    %s56 = smov 3
    %v57 = vld [vmem:[%s55] ss:$16 sm:%s56]
    %58 = vrot.lane.b32.xlu0 %v57, 64
    %v59 = vpop.permute.xlu0 %58
    %vm60 = vcmask 589312
    %61 = vst.msk [vmem:[#allocation0] sm:$0x3] %vm60, %v59
    %s62 = scalar_lea.vmem %s0, 7
    %s63 = smov 3
    %v64 = vld [vmem:[%s62] ss:$16 sm:%s63]
    %65 = vrot.lane.b32.xlu0 %v64, 56
    %v66 = vpop.permute.xlu0 %65
    %vm67 = vcmask 523712
    %68 = vst.msk [vmem:[#allocation0] sm:$0x3] %vm67, %v66
    %s69 = scalar_lea.vmem %s0, 6
    %s70 = smov 3
    %v71 = vld [vmem:[%s69] ss:$16 sm:%s70]
    %72 = vrot.lane.b32.xlu0 %v71, 48
    %v73 = vpop.permute.xlu0 %72
    %vm74 = vcmask 458112
    %75 = vst.msk [vmem:[#allocation0] sm:$0x3] %vm74, %v73
    %s76 = scalar_lea.vmem %s0, 5
    %s77 = smov 3
    %v78 = vld [vmem:[%s76] ss:$16 sm:%s77]
    %79 = vrot.lane.b32.xlu0 %v78, 40
    %v80 = vpop.permute.xlu0 %79
    %vm81 = vcmask 392512
    %82 = vst.msk [vmem:[#allocation0] sm:$0x3] %vm81, %v80
    %s83 = scalar_lea.vmem %s0, 4
    %s84 = smov 3
    %v85 = vld [vmem:[%s83] ss:$16 sm:%s84]
    %86 = vrot.lane.b32.xlu0 %v85, 32
    %v87 = vpop.permute.xlu0 %86
    %vm88 = vcmask 326912
    %89 = vst.msk [vmem:[#allocation0] sm:$0x3] %vm88, %v87
    %s90 = scalar_lea.vmem %s0, 3
    %s91 = smov 3
    %v92 = vld [vmem:[%s90] ss:$16 sm:%s91]
    %93 = vrot.lane.b32.xlu0 %v92, 24
    %v94 = vpop.permute.xlu0 %93
    %vm95 = vcmask 261312
    %96 = vst.msk [vmem:[#allocation0] sm:$0x3] %vm95, %v94
    %s97 = scalar_lea.vmem %s0, 2
    %s98 = smov 3
    %v99 = vld [vmem:[%s97] ss:$16 sm:%s98]
    %100 = vrot.lane.b32.xlu0 %v99, 16
    %v101 = vpop.permute.xlu0 %100
    %vm102 = vcmask 195712
    %103 = vst.msk [vmem:[#allocation0] sm:$0x3] %vm102, %v101
    %s104 = scalar_lea.vmem %s0, 1
    %s105 = smov 3
    %v106 = vld [vmem:[%s104] ss:$16 sm:%s105]
    %107 = vrot.lane.b32.xlu0 %v106, 8
    %v108 = vpop.permute.xlu0 %107
    %vm109 = vcmask 130112
    %110 = vst.msk [vmem:[#allocation0] sm:$0x3] %vm109, %v108
    %s112 = sshll.u32 1, 2
    %s113 = ssub.s32 %s112, 1
    %v115 = vld [vmem:[#allocation0] sm:%s113]
    %s116 = sshll.u32 1, 2
    %s117 = ssub.s32 %s116, 1
    %118 = vst [vmem:[%s1] sm:%s117] %v115

// kernel: downsample_forward.1
$region0: #{downsample_forward.1}
  #allocation0 [shape = 'u32[]', space=smem, size = 0x4, offset = 0x4, fixed_abs, tag = 'smem constant byte address 0x4 - core index']
  #allocation1 [shape = 'u32[144,128]{1,0:T(1,128)}', space=vmem, size = 0x12000, scoped, tag = 'internal scratch']
  %s0 = inlined_call_operand.vmem [shape: bf16[32,384], index: 0, kind: input, shape index: {}]
  %s1 = inlined_call_operand.vmem [shape: bf16[384,128], index: 1, kind: input, shape index: {}]
  %s2 = inlined_call_operand.vmem [shape: bf16[384,128], index: 2, kind: input, shape index: {}]
  %s3 = inlined_call_operand.vmem [shape: f32[2,128], index: 3, kind: input, shape index: {}]
  %s4 = inlined_call_operand.vmem [shape: f32[32,128], index: 4, kind: output, shape index: {0}]
  %s5 = inlined_call_operand.vmem [shape: f32[32,128], index: 5, kind: output, shape index: {1}]
  %6 = xla_tuple %s4, %s5
  %s7 = sld [smem:[#allocation0]]
  $region34: #{downsample_forward.1} parent=0
    _
  %s9 = ssub.s32 1, %s7
  %s10 = scalar_select 0, %s9, %s7
  // Predicated region
  $region2: #{downsample_forward.1} parent=0 // pred_check
    _
  $region3: #{downsample_forward.1} parent=0 // pred_check_branch
    %12 = sbr.rel (0) target = $region5
  $region4: #{downsample_forward.1} parent=0 // pred_region
    _
  $region5: #{downsample_forward.1} parent=0 // pred_fallthru
    _
  // Predicated region
  $region6: #{downsample_forward.1} parent=0 // pred_check
    _
  $region7: #{downsample_forward.1} parent=0 // pred_check_branch
    %14 = sbr.rel (0) target = $region9
  $region8: #{downsample_forward.1} parent=0 // pred_region
    _
  $region9: #{downsample_forward.1} parent=0 // pred_fallthru
    _
  // Predicated region
  $region10: #{downsample_forward.1} parent=0 // pred_check
    _
  $region11: #{downsample_forward.1} parent=0 // pred_check_branch
    %16 = sbr.rel (0) target = $region13
  $region12: #{downsample_forward.1} parent=0 // pred_region
    _
  $region13: #{downsample_forward.1} parent=0 // pred_fallthru
    _
  // Predicated region
  $region14: #{downsample_forward.1} parent=0 // pred_check
    _
  $region15: #{downsample_forward.1} parent=0 // pred_check_branch
    %18 = sbr.rel (0) target = $region17
  $region16: #{downsample_forward.1} parent=0 // pred_region
    _
  $region17: #{downsample_forward.1} parent=0 // pred_fallthru
    _
  %v20 = vld [vmem:[%s0] sm:$0xff]
  %v21 = vld [vmem:[%s0 + $0x8] sm:$0xf]
  %v22 = vld [vmem:[%s0 + $0xc] sm:$0xff]
  %v23 = vld [vmem:[%s0 + $0x14] sm:$0xf]
  %v24 = vld [vmem:[%s0 + $0x18] sm:$0xff]
  %v25 = vld [vmem:[%s0 + $0x20] sm:$0xf]
  %v26 = vld [vmem:[%s0 + $0x24] sm:$0xff]
  %v27 = vld [vmem:[%s0 + $0x2c] sm:$0xf]
  %v28 = vld [vmem:[%s1] sm:$0xf]
  %v29 = vld [vmem:[%s1 + $0x4] sm:$0xf]
  %v30 = vld [vmem:[%s1 + $0x8] sm:$0xf]
  %v31 = vld [vmem:[%s1 + $0xc] sm:$0xf]
  %v32 = vld [vmem:[%s1 + $0x10] sm:$0xf]
  %v33 = vld [vmem:[%s1 + $0x14] sm:$0xf]
  %v34 = vld [vmem:[%s1 + $0x18] sm:$0xf]
  %v35 = vld [vmem:[%s1 + $0x1c] sm:$0xf]
  %v36 = vld [vmem:[%s1 + $0x20] sm:$0xf]
  %v37 = vld [vmem:[%s1 + $0x24] sm:$0xf]
  %v38 = vld [vmem:[%s1 + $0x28] sm:$0xf]
  %v39 = vld [vmem:[%s1 + $0x2c] sm:$0xf]
  %v40 = vld [vmem:[%s1 + $0x30] sm:$0xf]
  %v41 = vld [vmem:[%s1 + $0x34] sm:$0xf]
  %v42 = vld [vmem:[%s1 + $0x38] sm:$0xf]
  %v43 = vld [vmem:[%s1 + $0x3c] sm:$0xf]
  %v44 = vld [vmem:[%s1 + $0x40] sm:$0xf]
  %v45 = vld [vmem:[%s1 + $0x44] sm:$0xf]
  %v46 = vld [vmem:[%s1 + $0x48] sm:$0xf]
  %v47 = vld [vmem:[%s1 + $0x4c] sm:$0xf]
  %v48 = vld [vmem:[%s1 + $0x50] sm:$0xf]
  %v49 = vld [vmem:[%s1 + $0x54] sm:$0xf]
  %v50 = vld [vmem:[%s1 + $0x58] sm:$0xf]
  %v51 = vld [vmem:[%s1 + $0x5c] sm:$0xf]
  %v52 = vld [vmem:[%s1 + $0x60] sm:$0xf]
  %v53 = vld [vmem:[%s1 + $0x64] sm:$0xf]
  %v54 = vld [vmem:[%s1 + $0x68] sm:$0xf]
  %v55 = vld [vmem:[%s1 + $0x6c] sm:$0xf]
  %v56 = vld [vmem:[%s1 + $0x70] sm:$0xf]
  %v57 = vld [vmem:[%s1 + $0x74] sm:$0xf]
  %v58 = vld [vmem:[%s1 + $0x78] sm:$0xf]
  %v59 = vld [vmem:[%s1 + $0x7c] sm:$0xf]
  %v60 = vld [vmem:[%s1 + $0x80] sm:$0xf]
  %v61 = vld [vmem:[%s1 + $0x84] sm:$0xf]
  %v62 = vld [vmem:[%s1 + $0x88] sm:$0xf]
  %v63 = vld [vmem:[%s1 + $0x8c] sm:$0xf]
  %v64 = vld [vmem:[%s1 + $0x90] sm:$0xf]
  %v65 = vld [vmem:[%s1 + $0x94] sm:$0xf]
  %v66 = vld [vmem:[%s1 + $0x98] sm:$0xf]
  %v67 = vld [vmem:[%s1 + $0x9c] sm:$0xf]
  %v68 = vld [vmem:[%s1 + $0xa0] sm:$0xf]
  %v69 = vld [vmem:[%s1 + $0xa4] sm:$0xf]
  %v70 = vld [vmem:[%s1 + $0xa8] sm:$0xf]
  %v71 = vld [vmem:[%s1 + $0xac] sm:$0xf]
  %v72 = vld [vmem:[%s1 + $0xb0] sm:$0xf]
  %v73 = vld [vmem:[%s1 + $0xb4] sm:$0xf]
  %v74 = vld [vmem:[%s1 + $0xb8] sm:$0xf]
  %v75 = vld [vmem:[%s1 + $0xbc] sm:$0xf]
  %v84 = vunpack.c.l.b16 %v20
  %v85 = vunpack.c.h.b16 %v20
  %v86 = vunpack.c.l.b16 %v21
  %v87 = vunpack.c.l.b16 %v22
  %v88 = vunpack.c.h.b16 %v22
  %v89 = vunpack.c.l.b16 %v23
  %v90 = vunpack.c.l.b16 %v24
  %v91 = vunpack.c.h.b16 %v24
  %v92 = vunpack.c.l.b16 %v25
  %v93 = vunpack.c.l.b16 %v26
  %v94 = vunpack.c.h.b16 %v26
  %v95 = vunpack.c.l.b16 %v27
  %v96 = vpack.c.b16 %v87, %v84
  %v97 = vpack.c.b16 %v88, %v85
  %v98 = vpack.c.b16 %v89, %v86
  %v99 = vpack.c.b16 %v93, %v90
  %v100 = vpack.c.b16 %v94, %v91
  %v101 = vpack.c.b16 %v95, %v92
  %v156 = vunpack.c.l.b16 %v28
  %v157 = vunpack.c.l.b16 %v29
  %v158 = vunpack.c.l.b16 %v30
  %v159 = vunpack.c.l.b16 %v31
  %v160 = vunpack.c.l.b16 %v32
  %v161 = vunpack.c.l.b16 %v33
  %v162 = vunpack.c.l.b16 %v34
  %v163 = vunpack.c.l.b16 %v35
  %v164 = vunpack.c.l.b16 %v36
  %v165 = vunpack.c.l.b16 %v37
  %v166 = vunpack.c.l.b16 %v38
  %v167 = vunpack.c.l.b16 %v39
  %v168 = vunpack.c.l.b16 %v40
  %v169 = vunpack.c.l.b16 %v41
  %v170 = vunpack.c.l.b16 %v42
  %v171 = vunpack.c.l.b16 %v43
  %v172 = vunpack.c.l.b16 %v44
  %v173 = vunpack.c.l.b16 %v45
  %v174 = vunpack.c.l.b16 %v46
  %v175 = vunpack.c.l.b16 %v47
  %v176 = vunpack.c.l.b16 %v48
  %v177 = vunpack.c.l.b16 %v49
  %v178 = vunpack.c.l.b16 %v50
  %v179 = vunpack.c.l.b16 %v51
  %v180 = vunpack.c.l.b16 %v52
  %v181 = vunpack.c.l.b16 %v53
  %v182 = vunpack.c.l.b16 %v54
  %v183 = vunpack.c.l.b16 %v55
  %v184 = vunpack.c.l.b16 %v56
  %v185 = vunpack.c.l.b16 %v57
  %v186 = vunpack.c.l.b16 %v58
  %v187 = vunpack.c.l.b16 %v59
  %v188 = vunpack.c.l.b16 %v60
  %v189 = vunpack.c.l.b16 %v61
  %v190 = vunpack.c.l.b16 %v62
  %v191 = vunpack.c.l.b16 %v63
  %v192 = vunpack.c.l.b16 %v64
  %v193 = vunpack.c.l.b16 %v65
  %v194 = vunpack.c.l.b16 %v66
  %v195 = vunpack.c.l.b16 %v67
  %v196 = vunpack.c.l.b16 %v68
  %v197 = vunpack.c.l.b16 %v69
  %v198 = vunpack.c.l.b16 %v70
  %v199 = vunpack.c.l.b16 %v71
  %v200 = vunpack.c.l.b16 %v72
  %v201 = vunpack.c.l.b16 %v73
  %v202 = vunpack.c.l.b16 %v74
  %v203 = vunpack.c.l.b16 %v75
  %v204 = vpack.c.b16 %v157, %v156
  %v205 = vpack.c.b16 %v159, %v158
  %v206 = vpack.c.b16 %v161, %v160
  %v207 = vpack.c.b16 %v163, %v162
  %v208 = vpack.c.b16 %v165, %v164
  %v209 = vpack.c.b16 %v167, %v166
  %v210 = vpack.c.b16 %v169, %v168
  %v211 = vpack.c.b16 %v171, %v170
  %v212 = vpack.c.b16 %v173, %v172
  %v213 = vpack.c.b16 %v175, %v174
  %v214 = vpack.c.b16 %v177, %v176
  %v215 = vpack.c.b16 %v179, %v178
  %v216 = vpack.c.b16 %v181, %v180
  %v217 = vpack.c.b16 %v183, %v182
  %v218 = vpack.c.b16 %v185, %v184
  %v219 = vpack.c.b16 %v187, %v186
  %v220 = vpack.c.b16 %v189, %v188
  %v221 = vpack.c.b16 %v191, %v190
  %v222 = vpack.c.b16 %v193, %v192
  %v223 = vpack.c.b16 %v195, %v194
  %v224 = vpack.c.b16 %v197, %v196
  %v225 = vpack.c.b16 %v199, %v198
  %v226 = vpack.c.b16 %v201, %v200
  %v227 = vpack.c.b16 %v203, %v202
  %252 = vmatprep.subr.bf16.mxu0 0
  %253 = vmatpush1.bf16.msra.mxu0 %v211
  %254 = vmatprep.subr.bf16.mxu0 0
  %255 = vmatpush1.bf16.msra.mxu0 %v210
  %256 = vmatprep.subr.bf16.mxu0 0
  %257 = vmatpush1.bf16.msra.mxu0 %v209
  %258 = vmatprep.subr.bf16.mxu0 0
  %259 = vmatpush1.bf16.msra.mxu0 %v208
  %260 = vmatprep.subr.bf16.mxu0 0
  %261 = vmatpush1.bf16.msra.mxu0 %v207
  %262 = vmatprep.subr.bf16.mxu0 0
  %263 = vmatpush1.bf16.msra.mxu0 %v206
  %264 = vmatprep.subr.bf16.mxu0 0
  %265 = vmatpush1.bf16.msra.mxu0 %v205
  %266 = vmatprep.subr.bf16.mxu0 0
  %267 = vmatpush1.bf16.msra.mxu0 %v204
  %268 = vmatprep.subr.bf16.mxu0 0
  %269 = vmatpush2.bf16.msra.mxu0 %v219
  %270 = vmatprep.subr.bf16.mxu0 0
  %271 = vmatpush2.bf16.msra.mxu0 %v218
  %272 = vmatprep.subr.bf16.mxu0 0
  %273 = vmatpush2.bf16.msra.mxu0 %v217
  %274 = vmatprep.subr.bf16.mxu0 0
  %275 = vmatpush2.bf16.msra.mxu0 %v216
  %276 = vmatprep.subr.bf16.mxu0 0
  %277 = vmatpush2.bf16.msra.mxu0 %v215
  %278 = vmatprep.subr.bf16.mxu0 0
  %279 = vmatpush2.bf16.msra.mxu0 %v214
  %280 = vmatprep.subr.bf16.mxu0 0
  %281 = vmatpush2.bf16.msra.mxu0 %v213
  %282 = vmatprep.subr.bf16.mxu0 0
  %283 = vmatpush2.bf16.msra.mxu0 %v212
  %284 = vmatprep.mubr.bf16.mxu0 %v97
  %285 = vmatmul.mubr.bf16.gmra.mxu0 %v96
  %v286 = vpop.f32.mrf.mxu0
  %v287 = vadd.f32 0.0, %v286
  %v288 = vpop.f32.mrf.mxu0
  %v289 = vpop.f32.mrf.mxu0
  %v290 = vadd.f32 0.0, %v289
  %v291 = vpop.f32.mrf.mxu0
  %292 = vmatprep.mubr.bf16.mxu0 %v100
  %293 = vmatmul.mubr.bf16.gmra.mxu0 %v99
  %v294 = vpop.f32.mrf.mxu0
  %v295 = vadd.f32 0.0, %v294
  %v296 = vpop.f32.mrf.mxu0
  %v297 = vpop.f32.mrf.mxu0
  %v298 = vadd.f32 0.0, %v297
  %v299 = vpop.f32.mrf.mxu0
  %300 = vdwg.mxu0
  %301 = vmatprep.subr.bf16.mxu0 0
  %302 = vmatpush1.bf16.msra.mxu0 %v227
  %303 = vmatprep.subr.bf16.mxu0 0
  %304 = vmatpush1.bf16.msra.mxu0 %v226
  %305 = vmatprep.subr.bf16.mxu0 0
  %306 = vmatpush1.bf16.msra.mxu0 %v225
  %307 = vmatprep.subr.bf16.mxu0 0
  %308 = vmatpush1.bf16.msra.mxu0 %v224
  %309 = vmatprep.subr.bf16.mxu0 0
  %310 = vmatpush1.bf16.msra.mxu0 %v223
  %311 = vmatprep.subr.bf16.mxu0 0
  %312 = vmatpush1.bf16.msra.mxu0 %v222
  %313 = vmatprep.subr.bf16.mxu0 0
  %314 = vmatpush1.bf16.msra.mxu0 %v221
  %315 = vmatprep.subr.bf16.mxu0 0
  %316 = vmatpush1.bf16.msra.mxu0 %v220
  %317 = vmatprep.subr.bf16.mxu0 0
  %318 = vmatpush2.bf16.msra.mxu0 0
  %319 = vmatprep.subr.bf16.mxu0 0
  %320 = vmatpush2.bf16.msra.mxu0 0
  %321 = vmatprep.subr.bf16.mxu0 0
  %322 = vmatpush2.bf16.msra.mxu0 0
  %323 = vmatprep.subr.bf16.mxu0 0
  %324 = vmatpush2.bf16.msra.mxu0 0
  %325 = vmatprep.subr.bf16.mxu0 0
  %326 = vmatpush2.bf16.msra.mxu0 0
  %327 = vmatprep.subr.bf16.mxu0 0
  %328 = vmatpush2.bf16.msra.mxu0 0
  %329 = vmatprep.subr.bf16.mxu0 0
  %330 = vmatpush2.bf16.msra.mxu0 0
  %331 = vmatprep.subr.bf16.mxu0 0
  %332 = vmatpush2.bf16.msra.mxu0 0
  %333 = vmatprep.mubr.bf16.mxu0 0
  %334 = vmatmul.mubr.bf16.gmra.mxu0 %v98
  %v335 = vpop.f32.mrf.mxu0
  %v336 = vadd.f32 %v287, %v335
  %v337 = vpop.f32.mrf.mxu0
  %v338 = vpop.f32.mrf.mxu0
  %v339 = vadd.f32 %v290, %v338
  %v340 = vpop.f32.mrf.mxu0
  %341 = vmatprep.mubr.bf16.mxu0 0
  %342 = vmatmul.mubr.bf16.gmra.mxu0 %v101
  %v343 = vpop.f32.mrf.mxu0
  %v344 = vadd.f32 %v295, %v343
  %v345 = vpop.f32.mrf.mxu0
  %v346 = vpop.f32.mrf.mxu0
  %v347 = vadd.f32 %v298, %v346
  %v348 = vpop.f32.mrf.mxu0
  %349 = vdwg.mxu0
  %v350 = vld [vmem:[%s3] sm:$0x3]
  %v353 = vunpack.c.l.s4 1966171168
  %v354 = vunpack.c.0.s8 %v353
  %v355 = vlaneseq
  %v356 = vshrl.u32 %v355, 7
  %v357 = vsub.s32 %v354, %v356
  %v358 = vrot.slane %v350, %v357
  %v359 = vcombine.high %v358, %v358
  %v361 = vunpack.c.l.s4 1966171168
  %v362 = vunpack.c.0.s8 %v361
  %v363 = vlaneseq
  %v364 = vshrl.u32 %v363, 7
  %v365 = vsub.s32 %v362, %v364
  %v366 = vrot.slane %v358, %v365
  %v368 = vunpack.c.l.s4 1966171168
  %v369 = vunpack.c.0.s8 %v368
  %v370 = vlaneseq
  %v371 = vshrl.u32 %v370, 7
  %v372 = vsub.s32 %v369, %v371
  %v373 = vrot.slane %v359, %v372
  %v374 = vlaneseq
  %v375 = vshrl.u32 %v374, 7
  %v376 = vsub.s32 0, %v375
  %v377 = vrot.slane %v366, %v376
  %v378 = vlaneseq
  %v379 = vshrl.u32 %v378, 7
  %v380 = vsub.s32 0, %v379
  %v381 = vrot.slane %v373, %v380
  %v384 = vadd.f32 %v336, %v339
  %v385 = vadd.f32 %v384, %v344
  %v386 = vadd.f32 %v385, %v347
  %v387 = vrot.slane %v386, 4
  %v388 = vadd.f32 %v386, %v387
  %v389 = vrot.slane %v388, 2
  %v390 = vadd.f32 %v388, %v389
  %v391 = vrot.slane %v390, 1
  %v392 = vadd.f32 %v390, %v391
  %393 = vrot.lane.b32.xlu0 %v392, 8
  %v394 = vpop.permute.xlu0 %393
  %v395 = vadd.f32 %v392, %v394
  %396 = vrot.lane.b32.xlu0 %v395, 16
  %v397 = vpop.permute.xlu0 %396
  %v398 = vadd.f32 %v395, %v397
  %399 = vrot.lane.b32.xlu0 %v398, 32
  %v400 = vpop.permute.xlu0 %399
  %v401 = vadd.f32 %v398, %v400
  %402 = vrot.lane.b32.xlu0 %v401, 64
  %v403 = vpop.permute.xlu0 %402
  %v404 = vadd.f32 %v401, %v403
  %v405 = vmul.f32 %v404, 0.001953125
  %v406 = vlaneseq
  %v407 = vshrl.u32 %v406, 7
  %v408 = vsub.s32 0, %v407
  %v409 = vrot.slane %v405, %v408
  %v410 = vsub.f32 %v336, %v409
  %v411 = vsub.f32 %v339, %v409
  %v412 = vsub.f32 %v344, %v409
  %v413 = vsub.f32 %v347, %v409
  %v414 = vmul.f32 %v410, %v410
  %v415 = vmul.f32 %v411, %v411
  %v416 = vmul.f32 %v412, %v412
  %v417 = vmul.f32 %v413, %v413
  %v418 = vadd.f32 %v414, %v415
  %v419 = vadd.f32 %v418, %v416
  %v420 = vadd.f32 %v419, %v417
  %v421 = vrot.slane %v420, 4
  %v422 = vadd.f32 %v420, %v421
  %v423 = vrot.slane %v422, 2
  %v424 = vadd.f32 %v422, %v423
  %v425 = vrot.slane %v424, 1
  %v426 = vadd.f32 %v424, %v425
  %427 = vrot.lane.b32.xlu0 %v426, 8
  %v428 = vpop.permute.xlu0 %427
  %v429 = vadd.f32 %v426, %v428
  %430 = vrot.lane.b32.xlu0 %v429, 16
  %v431 = vpop.permute.xlu0 %430
  %v432 = vadd.f32 %v429, %v431
  %433 = vrot.lane.b32.xlu0 %v432, 32
  %v434 = vpop.permute.xlu0 %433
  %v435 = vadd.f32 %v432, %v434
  %436 = vrot.lane.b32.xlu0 %v435, 64
  %v437 = vpop.permute.xlu0 %436
  %v438 = vadd.f32 %v435, %v437
  %v439 = vmul.f32 %v438, 0.001953125
  %v440 = vadd.f32 %v439, 1e-05
  %v441 = vrsqrt.pop %v440
  %v442 = vlaneseq
  %v443 = vshrl.u32 %v442, 7
  %v444 = vsub.s32 0, %v443
  %v445 = vrot.slane %v441, %v444
  %v446 = vmul.f32 %v410, %v445
  %v447 = vmul.f32 %v411, %v445
  %v448 = vmul.f32 %v412, %v445
  %v449 = vmul.f32 %v413, %v445
  %v450 = vmax.f32 %v446, 0.0
  %v451 = vmax.f32 %v447, 0.0
  %v452 = vmax.f32 %v448, 0.0
  %v453 = vmax.f32 %v449, 0.0
  %v454 = vadd.f32 %v450, %v377
  %v455 = vadd.f32 %v451, %v377
  %v456 = vadd.f32 %v452, %v381
  %v457 = vadd.f32 %v453, %v381
  %v458 = vlaneseq
  %v459 = vshrl.u32 %v458, 7
  %v460 = vadd.s32 %v459, 8
  %v461 = vadd.s32 %v459, 16
  %v462 = vadd.s32 %v459, 24
  %vm463 = vcmp.lt.s32.totalorder %v459, 0
  %v464 = vsub.s32 0, %v459
  %v465 = vsel %vm463, %v464, %v459
  %v466 = vshrl.u32 %v465, 4
  %v467 = vand.u32 %v465, 15
  %v468 = vsub.s32 0, %v467
  %v469 = vsel %vm463, %v468, %v467
  %vm470 = vcmp.lt.s32.totalorder %v460, 0
  %v471 = vsub.s32 0, %v460
  %v472 = vsel %vm470, %v471, %v460
  %v473 = vshrl.u32 %v472, 4
  %v474 = vand.u32 %v472, 15
  %v475 = vsub.s32 0, %v474
  %v476 = vsel %vm470, %v475, %v474
  %vm477 = vcmp.lt.s32.totalorder %v461, 0
  %v478 = vsub.s32 0, %v461
  %v479 = vsel %vm477, %v478, %v461
  %v480 = vshrl.u32 %v479, 4
  %v481 = vand.u32 %v479, 15
  %v482 = vsub.s32 0, %v481
  %v483 = vsel %vm477, %v482, %v481
  %vm484 = vcmp.lt.s32.totalorder %v462, 0
  %v485 = vsub.s32 0, %v462
  %v486 = vsel %vm484, %v485, %v462
  %v487 = vshrl.u32 %v486, 4
  %v488 = vand.u32 %v486, 15
  %v489 = vsub.s32 0, %v488
  %v490 = vsel %vm484, %v489, %v488
  %vm491 = vcmp.ne.s32.totalorder %v469, 0
  %vm492 = vcmp.ne.s32.totalorder %v476, 0
  %vm493 = vcmp.ne.s32.totalorder %v483, 0
  %vm494 = vcmp.ne.s32.totalorder %v490, 0
  %vm495 = vcmp.lt.s32.totalorder %v469, 0
  %vm496 = vcmp.lt.s32.totalorder %v476, 0
  %vm497 = vcmp.lt.s32.totalorder %v483, 0
  %vm498 = vcmp.lt.s32.totalorder %v490, 0
  %vm499 = vmand %vm495, %vm491
  %vm500 = vmand %vm496, %vm492
  %vm501 = vmand %vm497, %vm493
  %vm502 = vmand %vm498, %vm494
  %v503 = vadd.s32 %v469, 16
  %v504 = vadd.s32 %v476, 16
  %v505 = vadd.s32 %v483, 16
  %v506 = vadd.s32 %v490, 16
  %v507 = vsel %vm499, %v503, %v469
  %v508 = vsel %vm500, %v504, %v476
  %v509 = vsel %vm501, %v505, %v483
  %v510 = vsel %vm502, %v506, %v490
  %vm511 = vcmp.eq.s32.totalorder %v507, 0
  %vm512 = vcmp.eq.s32.totalorder %v508, 0
  %vm513 = vcmp.eq.s32.totalorder %v509, 0
  %vm514 = vcmp.eq.s32.totalorder %v510, 0
  %v515 = vrot.slane %v454, 7
  %v516 = vrot.slane %v455, 7
  %v517 = vrot.slane %v456, 7
  %v518 = vrot.slane %v457, 7
  %vm519 = vcmp.lt.s32.totalorder %v459, 1
  %v520 = vsel %vm519, %v517, %v518
  %v521 = vsel %vm519, %v516, %v517
  %v522 = vsel %vm519, %v515, %v516
  %v523 = vsel %vm519, %v518, %v515
  %v524 = vsel %vm511, 0.0, %v523
  %v525 = vsel %vm512, 0.0, %v522
  %v526 = vsel %vm513, 0.0, %v521
  %v527 = vsel %vm514, 0.0, %v520
  %vm528 = vcmp.eq.s32.totalorder %v507, 15
  %vm529 = vcmp.eq.s32.totalorder %v508, 15
  %vm530 = vcmp.eq.s32.totalorder %v509, 15
  %vm531 = vcmp.eq.s32.totalorder %v510, 15
  %v532 = vrot.slane %v454, 1
  %v533 = vrot.slane %v455, 1
  %v534 = vrot.slane %v456, 1
  %v535 = vrot.slane %v457, 1
  %vm536 = vcmp.lt.s32.totalorder %v459, 7
  %v537 = vsel %vm536, %v534, %v535
  %v538 = vsel %vm536, %v533, %v534
  %v539 = vsel %vm536, %v532, %v533
  %v540 = vsel %vm536, %v535, %v532
  %v541 = vsel %vm528, 0.0, %v539
  %v542 = vsel %vm529, 0.0, %v538
  %v543 = vsel %vm530, 0.0, %v537
  %v544 = vsel %vm531, 0.0, %v540
  %v545 = vpack.c.bf16 %v525, %v524
  %v546 = vpack.c.bf16 %v455, %v454
  %v547 = vpack.c.bf16 %v542, %v541
  %v548 = vpack.c.bf16 %v527, %v526
  %v549 = vpack.c.bf16 %v457, %v456
  %v550 = vpack.c.bf16 %v544, %v543
  %v551 = vld [vmem:[%s2] sm:$0xf]
  %v552 = vld [vmem:[%s2 + $0x4] sm:$0xf]
  %v553 = vld [vmem:[%s2 + $0x8] sm:$0xf]
  %v554 = vld [vmem:[%s2 + $0xc] sm:$0xf]
  %v555 = vld [vmem:[%s2 + $0x10] sm:$0xf]
  %v556 = vld [vmem:[%s2 + $0x14] sm:$0xf]
  %v557 = vld [vmem:[%s2 + $0x18] sm:$0xf]
  %v558 = vld [vmem:[%s2 + $0x1c] sm:$0xf]
  %v559 = vld [vmem:[%s2 + $0x20] sm:$0xf]
  %v560 = vld [vmem:[%s2 + $0x24] sm:$0xf]
  %v561 = vld [vmem:[%s2 + $0x28] sm:$0xf]
  %v562 = vld [vmem:[%s2 + $0x2c] sm:$0xf]
  %v563 = vld [vmem:[%s2 + $0x30] sm:$0xf]
  %v564 = vld [vmem:[%s2 + $0x34] sm:$0xf]
  %v565 = vld [vmem:[%s2 + $0x38] sm:$0xf]
  %v566 = vld [vmem:[%s2 + $0x3c] sm:$0xf]
  %v567 = vld [vmem:[%s2 + $0x40] sm:$0xf]
  %v568 = vld [vmem:[%s2 + $0x44] sm:$0xf]
  %v569 = vld [vmem:[%s2 + $0x48] sm:$0xf]
  %v570 = vld [vmem:[%s2 + $0x4c] sm:$0xf]
  %v571 = vld [vmem:[%s2 + $0x50] sm:$0xf]
  %v572 = vld [vmem:[%s2 + $0x54] sm:$0xf]
  %v573 = vld [vmem:[%s2 + $0x58] sm:$0xf]
  %v574 = vld [vmem:[%s2 + $0x5c] sm:$0xf]
  %v575 = vld [vmem:[%s2 + $0x60] sm:$0xf]
  %v576 = vld [vmem:[%s2 + $0x64] sm:$0xf]
  %v577 = vld [vmem:[%s2 + $0x68] sm:$0xf]
  %v578 = vld [vmem:[%s2 + $0x6c] sm:$0xf]
  %v579 = vld [vmem:[%s2 + $0x70] sm:$0xf]
  %v580 = vld [vmem:[%s2 + $0x74] sm:$0xf]
  %v581 = vld [vmem:[%s2 + $0x78] sm:$0xf]
  %v582 = vld [vmem:[%s2 + $0x7c] sm:$0xf]
  %v583 = vld [vmem:[%s2 + $0x80] sm:$0xf]
  %v584 = vld [vmem:[%s2 + $0x84] sm:$0xf]
  %v585 = vld [vmem:[%s2 + $0x88] sm:$0xf]
  %v586 = vld [vmem:[%s2 + $0x8c] sm:$0xf]
  %v587 = vld [vmem:[%s2 + $0x90] sm:$0xf]
  %v588 = vld [vmem:[%s2 + $0x94] sm:$0xf]
  %v589 = vld [vmem:[%s2 + $0x98] sm:$0xf]
  %v590 = vld [vmem:[%s2 + $0x9c] sm:$0xf]
  %v591 = vld [vmem:[%s2 + $0xa0] sm:$0xf]
  %v592 = vld [vmem:[%s2 + $0xa4] sm:$0xf]
  %v593 = vld [vmem:[%s2 + $0xa8] sm:$0xf]
  %v594 = vld [vmem:[%s2 + $0xac] sm:$0xf]
  %v595 = vld [vmem:[%s2 + $0xb0] sm:$0xf]
  %v596 = vld [vmem:[%s2 + $0xb4] sm:$0xf]
  %v597 = vld [vmem:[%s2 + $0xb8] sm:$0xf]
  %v598 = vld [vmem:[%s2 + $0xbc] sm:$0xf]
  %v647 = vunpack.c.l.b16 %v551
  %v648 = vunpack.c.l.b16 %v552
  %v649 = vunpack.c.l.b16 %v553
  %v650 = vunpack.c.l.b16 %v554
  %v651 = vunpack.c.l.b16 %v555
  %v652 = vunpack.c.l.b16 %v556
  %v653 = vunpack.c.l.b16 %v557
  %v654 = vunpack.c.l.b16 %v558
  %v655 = vunpack.c.l.b16 %v559
  %v656 = vunpack.c.l.b16 %v560
  %v657 = vunpack.c.l.b16 %v561
  %v658 = vunpack.c.l.b16 %v562
  %v659 = vunpack.c.l.b16 %v563
  %v660 = vunpack.c.l.b16 %v564
  %v661 = vunpack.c.l.b16 %v565
  %v662 = vunpack.c.l.b16 %v566
  %v663 = vunpack.c.l.b16 %v567
  %v664 = vunpack.c.l.b16 %v568
  %v665 = vunpack.c.l.b16 %v569
  %v666 = vunpack.c.l.b16 %v570
  %v667 = vunpack.c.l.b16 %v571
  %v668 = vunpack.c.l.b16 %v572
  %v669 = vunpack.c.l.b16 %v573
  %v670 = vunpack.c.l.b16 %v574
  %v671 = vunpack.c.l.b16 %v575
  %v672 = vunpack.c.l.b16 %v576
  %v673 = vunpack.c.l.b16 %v577
  %v674 = vunpack.c.l.b16 %v578
  %v675 = vunpack.c.l.b16 %v579
  %v676 = vunpack.c.l.b16 %v580
  %v677 = vunpack.c.l.b16 %v581
  %v678 = vunpack.c.l.b16 %v582
  %v679 = vunpack.c.l.b16 %v583
  %v680 = vunpack.c.l.b16 %v584
  %v681 = vunpack.c.l.b16 %v585
  %v682 = vunpack.c.l.b16 %v586
  %v683 = vunpack.c.l.b16 %v587
  %v684 = vunpack.c.l.b16 %v588
  %v685 = vunpack.c.l.b16 %v589
  %v686 = vunpack.c.l.b16 %v590
  %v687 = vunpack.c.l.b16 %v591
  %v688 = vunpack.c.l.b16 %v592
  %v689 = vunpack.c.l.b16 %v593
  %v690 = vunpack.c.l.b16 %v594
  %v691 = vunpack.c.l.b16 %v595
  %v692 = vunpack.c.l.b16 %v596
  %v693 = vunpack.c.l.b16 %v597
  %v694 = vunpack.c.l.b16 %v598
  %v695 = vpack.c.b16 %v648, %v647
  %v696 = vpack.c.b16 %v650, %v649
  %v697 = vpack.c.b16 %v652, %v651
  %v698 = vpack.c.b16 %v654, %v653
  %v699 = vpack.c.b16 %v656, %v655
  %v700 = vpack.c.b16 %v658, %v657
  %v701 = vpack.c.b16 %v660, %v659
  %v702 = vpack.c.b16 %v662, %v661
  %v703 = vpack.c.b16 %v664, %v663
  %v704 = vpack.c.b16 %v666, %v665
  %v705 = vpack.c.b16 %v668, %v667
  %v706 = vpack.c.b16 %v670, %v669
  %v707 = vpack.c.b16 %v672, %v671
  %v708 = vpack.c.b16 %v674, %v673
  %v709 = vpack.c.b16 %v676, %v675
  %v710 = vpack.c.b16 %v678, %v677
  %v711 = vpack.c.b16 %v680, %v679
  %v712 = vpack.c.b16 %v682, %v681
  %v713 = vpack.c.b16 %v684, %v683
  %v714 = vpack.c.b16 %v686, %v685
  %v715 = vpack.c.b16 %v688, %v687
  %v716 = vpack.c.b16 %v690, %v689
  %v717 = vpack.c.b16 %v692, %v691
  %v718 = vpack.c.b16 %v694, %v693
  %743 = vmatprep.subr.bf16.mxu0 0
  %744 = vmatpush1.bf16.msra.mxu0 %v702
  %745 = vmatprep.subr.bf16.mxu0 0
  %746 = vmatpush1.bf16.msra.mxu0 %v701
  %747 = vmatprep.subr.bf16.mxu0 0
  %748 = vmatpush1.bf16.msra.mxu0 %v700
  %749 = vmatprep.subr.bf16.mxu0 0
  %750 = vmatpush1.bf16.msra.mxu0 %v699
  %751 = vmatprep.subr.bf16.mxu0 0
  %752 = vmatpush1.bf16.msra.mxu0 %v698
  %753 = vmatprep.subr.bf16.mxu0 0
  %754 = vmatpush1.bf16.msra.mxu0 %v697
  %755 = vmatprep.subr.bf16.mxu0 0
  %756 = vmatpush1.bf16.msra.mxu0 %v696
  %757 = vmatprep.subr.bf16.mxu0 0
  %758 = vmatpush1.bf16.msra.mxu0 %v695
  %759 = vmatprep.subr.bf16.mxu0 0
  %760 = vmatpush2.bf16.msra.mxu0 %v710
  %761 = vmatprep.subr.bf16.mxu0 0
  %762 = vmatpush2.bf16.msra.mxu0 %v709
  %763 = vmatprep.subr.bf16.mxu0 0
  %764 = vmatpush2.bf16.msra.mxu0 %v708
  %765 = vmatprep.subr.bf16.mxu0 0
  %766 = vmatpush2.bf16.msra.mxu0 %v707
  %767 = vmatprep.subr.bf16.mxu0 0
  %768 = vmatpush2.bf16.msra.mxu0 %v706
  %769 = vmatprep.subr.bf16.mxu0 0
  %770 = vmatpush2.bf16.msra.mxu0 %v705
  %771 = vmatprep.subr.bf16.mxu0 0
  %772 = vmatpush2.bf16.msra.mxu0 %v704
  %773 = vmatprep.subr.bf16.mxu0 0
  %774 = vmatpush2.bf16.msra.mxu0 %v703
  %775 = vmatprep.mubr.bf16.mxu0 %v546
  %776 = vmatmul.mubr.bf16.gmra.mxu0 %v545
  %v777 = vpop.f32.mrf.mxu0
  %v778 = vadd.f32 0.0, %v777
  %v779 = vpop.f32.mrf.mxu0
  %v780 = vpop.f32.mrf.mxu0
  %v781 = vadd.f32 0.0, %v780
  %v782 = vpop.f32.mrf.mxu0
  %783 = vmatprep.mubr.bf16.mxu0 %v549
  %784 = vmatmul.mubr.bf16.gmra.mxu0 %v548
  %v785 = vpop.f32.mrf.mxu0
  %v786 = vadd.f32 0.0, %v785
  %v787 = vpop.f32.mrf.mxu0
  %v788 = vpop.f32.mrf.mxu0
  %v789 = vadd.f32 0.0, %v788
  %v790 = vpop.f32.mrf.mxu0
  %791 = vdwg.mxu0
  %792 = vmatprep.subr.bf16.mxu0 0
  %793 = vmatpush1.bf16.msra.mxu0 %v718
  %794 = vmatprep.subr.bf16.mxu0 0
  %795 = vmatpush1.bf16.msra.mxu0 %v717
  %796 = vmatprep.subr.bf16.mxu0 0
  %797 = vmatpush1.bf16.msra.mxu0 %v716
  %798 = vmatprep.subr.bf16.mxu0 0
  %799 = vmatpush1.bf16.msra.mxu0 %v715
  %800 = vmatprep.subr.bf16.mxu0 0
  %801 = vmatpush1.bf16.msra.mxu0 %v714
  %802 = vmatprep.subr.bf16.mxu0 0
  %803 = vmatpush1.bf16.msra.mxu0 %v713
  %804 = vmatprep.subr.bf16.mxu0 0
  %805 = vmatpush1.bf16.msra.mxu0 %v712
  %806 = vmatprep.subr.bf16.mxu0 0
  %807 = vmatpush1.bf16.msra.mxu0 %v711
  %808 = vmatprep.subr.bf16.mxu0 0
  %809 = vmatpush2.bf16.msra.mxu0 0
  %810 = vmatprep.subr.bf16.mxu0 0
  %811 = vmatpush2.bf16.msra.mxu0 0
  %812 = vmatprep.subr.bf16.mxu0 0
  %813 = vmatpush2.bf16.msra.mxu0 0
  %814 = vmatprep.subr.bf16.mxu0 0
  %815 = vmatpush2.bf16.msra.mxu0 0
  %816 = vmatprep.subr.bf16.mxu0 0
  %817 = vmatpush2.bf16.msra.mxu0 0
  %818 = vmatprep.subr.bf16.mxu0 0
  %819 = vmatpush2.bf16.msra.mxu0 0
  %820 = vmatprep.subr.bf16.mxu0 0
  %821 = vmatpush2.bf16.msra.mxu0 0
  %822 = vmatprep.subr.bf16.mxu0 0
  %823 = vmatpush2.bf16.msra.mxu0 0
  %824 = vmatprep.mubr.bf16.mxu0 0
  %825 = vmatmul.mubr.bf16.gmra.mxu0 %v547
  %v826 = vpop.f32.mrf.mxu0
  %v827 = vadd.f32 %v778, %v826
  %v828 = vpop.f32.mrf.mxu0
  %v829 = vpop.f32.mrf.mxu0
  %v830 = vadd.f32 %v781, %v829
  %v831 = vpop.f32.mrf.mxu0
  %832 = vmatprep.mubr.bf16.mxu0 0
  %833 = vmatmul.mubr.bf16.gmra.mxu0 %v550
  %v834 = vpop.f32.mrf.mxu0
  %v835 = vadd.f32 %v786, %v834
  %v836 = vpop.f32.mrf.mxu0
  %v837 = vpop.f32.mrf.mxu0
  %v838 = vadd.f32 %v789, %v837
  %v839 = vpop.f32.mrf.mxu0
  %840 = vdwg.mxu0
  %v841 = vadd.f32 %v827, %v830
  %v842 = vadd.f32 %v841, %v835
  %v843 = vadd.f32 %v842, %v838
  %v844 = vrot.slane %v843, 4
  %v845 = vadd.f32 %v843, %v844
  %v846 = vrot.slane %v845, 2
  %v847 = vadd.f32 %v845, %v846
  %v848 = vrot.slane %v847, 1
  %v849 = vadd.f32 %v847, %v848
  %850 = vrot.lane.b32.xlu0 %v849, 8
  %v851 = vpop.permute.xlu0 %850
  %v852 = vadd.f32 %v849, %v851
  %853 = vrot.lane.b32.xlu0 %v852, 16
  %v854 = vpop.permute.xlu0 %853
  %v855 = vadd.f32 %v852, %v854
  %856 = vrot.lane.b32.xlu0 %v855, 32
  %v857 = vpop.permute.xlu0 %856
  %v858 = vadd.f32 %v855, %v857
  %859 = vrot.lane.b32.xlu0 %v858, 64
  %v860 = vpop.permute.xlu0 %859
  %v861 = vadd.f32 %v858, %v860
  %v862 = vmul.f32 %v861, 0.001953125
  %v863 = vlaneseq
  %v864 = vshrl.u32 %v863, 7
  %v865 = vsub.s32 0, %v864
  %v866 = vrot.slane %v862, %v865
  %v867 = vsub.f32 %v827, %v866
  %v868 = vsub.f32 %v830, %v866
  %v869 = vsub.f32 %v835, %v866
  %v870 = vsub.f32 %v838, %v866
  %v871 = vmul.f32 %v867, %v867
  %v872 = vmul.f32 %v868, %v868
  %v873 = vmul.f32 %v869, %v869
  %v874 = vmul.f32 %v870, %v870
  %v875 = vadd.f32 %v871, %v872
  %v876 = vadd.f32 %v875, %v873
  %v877 = vadd.f32 %v876, %v874
  %v878 = vrot.slane %v877, 4
  %v879 = vadd.f32 %v877, %v878
  %v880 = vrot.slane %v879, 2
  %v881 = vadd.f32 %v879, %v880
  %v882 = vrot.slane %v881, 1
  %v883 = vadd.f32 %v881, %v882
  %884 = vrot.lane.b32.xlu0 %v883, 8
  %v885 = vpop.permute.xlu0 %884
  %v886 = vadd.f32 %v883, %v885
  %887 = vrot.lane.b32.xlu0 %v886, 16
  %v888 = vpop.permute.xlu0 %887
  %v889 = vadd.f32 %v886, %v888
  %890 = vrot.lane.b32.xlu0 %v889, 32
  %v891 = vpop.permute.xlu0 %890
  %v892 = vadd.f32 %v889, %v891
  %893 = vrot.lane.b32.xlu0 %v892, 64
  %v894 = vpop.permute.xlu0 %893
  %v895 = vadd.f32 %v892, %v894
  %v896 = vmul.f32 %v895, 0.001953125
  %v897 = vadd.f32 %v896, 1e-05
  %v898 = vrsqrt.pop %v897
  %v899 = vlaneseq
  %v900 = vshrl.u32 %v899, 7
  %v901 = vsub.s32 0, %v900
  %v902 = vrot.slane %v898, %v901
  %v903 = vmul.f32 %v867, %v902
  %v904 = vmul.f32 %v868, %v902
  %v905 = vmul.f32 %v869, %v902
  %v906 = vmul.f32 %v870, %v902
  %v907 = vmax.f32 %v903, 0.0
  %v908 = vmax.f32 %v904, 0.0
  %v909 = vmax.f32 %v905, 0.0
  %v910 = vmax.f32 %v906, 0.0
  %911 = vst [vmem:[%s4] sm:$0xff] %v907
  %912 = vst [vmem:[%s4 + $0x8] sm:$0xff] %v908
  %913 = vst [vmem:[%s4 + $0x10] sm:$0xff] %v909
  %914 = vst [vmem:[%s4 + $0x18] sm:$0xff] %v910
  %915 = vrot.lane.b32.xlu0 %v907, 120
  %v916 = vpop.permute.xlu0 %915
  %917 = vrot.lane.b32.xlu0 %v908, 120
  %v918 = vpop.permute.xlu0 %917
  %919 = vrot.lane.b32.xlu0 %v909, 120
  %v920 = vpop.permute.xlu0 %919
  %921 = vrot.lane.b32.xlu0 %v910, 120
  %v922 = vpop.permute.xlu0 %921
  %v923 = vmax.f32 %v907, %v916
  %v924 = vmax.f32 %v908, %v918
  %v925 = vmax.f32 %v909, %v920
  %v926 = vmax.f32 %v910, %v922
  %v927 = vrot.slane %v923, 1
  %v928 = vrot.slane %v924, 1
  %v929 = vrot.slane %v925, 1
  %v930 = vrot.slane %v926, 1
  %v931 = vsel %vm536, %v929, %v930
  %v932 = vsel %vm536, %v928, %v929
  %v933 = vsel %vm536, %v927, %v928
  %v934 = vsel %vm536, %v930, %v927
  %v935 = vmax.f32 %v923, %v933
  %v936 = vmax.f32 %v924, %v932
  %v937 = vmax.f32 %v925, %v931
  %v938 = vmax.f32 %v926, %v934
  %939 = vst [vmem:[%s5] sm:$0xff] %v935
  %940 = vst [vmem:[%s5 + $0x8] sm:$0xff] %v936
  %941 = vst [vmem:[%s5 + $0x10] sm:$0xff] %v937
  %942 = vst [vmem:[%s5 + $0x18] sm:$0xff] %v938
  // Predicated region
  $region18: #{downsample_forward.1} parent=0 // pred_check
    _
  $region19: #{downsample_forward.1} parent=0 // pred_check_branch
    %944 = sbr.rel (0) target = $region21
  $region20: #{downsample_forward.1} parent=0 // pred_region
    _
  $region21: #{downsample_forward.1} parent=0 // pred_fallthru
    _
  // Predicated region
  $region22: #{downsample_forward.1} parent=0 // pred_check
    _
  $region23: #{downsample_forward.1} parent=0 // pred_check_branch
    %946 = sbr.rel (0) target = $region25
  $region24: #{downsample_forward.1} parent=0 // pred_region
    _
  $region25: #{downsample_forward.1} parent=0 // pred_fallthru
    _
  // Predicated region
  $region26: #{downsample_forward.1} parent=0 // pred_check
    _
  $region27: #{downsample_forward.1} parent=0 // pred_check_branch
    %948 = sbr.rel (0) target = $region29
  $region28: #{downsample_forward.1} parent=0 // pred_region
    _
  $region29: #{downsample_forward.1} parent=0 // pred_fallthru
    _
  // Predicated region
  $region30: #{downsample_forward.1} parent=0 // pred_check
    _
  $region31: #{downsample_forward.1} parent=0 // pred_check_branch
    %950 = sbr.rel (0) target = $region33
  $region32: #{downsample_forward.1} parent=0 // pred_region
    _
  $region33: #{downsample_forward.1} parent=0 // pred_fallthru
    _

</llo_original>
